<compile_context>
chip_gen: v7x
topology: tpu7x:2x2x1
jax: 0.10.0
libtpu: 0.0.40
codegen_flags: <defaults>
</compile_context>

<pallas_src>
import jax
import jax.numpy as jnp
from jax.experimental import pallas as pl
from jax.experimental.pallas import tpu as pltpu

# ----- synthetic config (small, structure-preserving) -----
N_ITEMS = 128          # analog of 56242
N_USERS = 64           # analog of 61109 - 56242 = 4867
FEATURE_DIM = 64       # analog of x.shape[1] - 61109
D_TOTAL = N_ITEMS + N_USERS + FEATURE_DIM   # 256

LAYERS0 = 16           # layers[0], must be even
EMB = LAYERS0 // 2     # embedding_dim = 8
FC_IN = EMB * 4        # 32
ENCODER_DIM = 32       # config['encoder_dim']

BATCH = 16

# ----- tile config -----
TB = 8                 # batch tile (raise to 256+ at real batch sizes; >=16 for bf16)
TK = 128               # feature (reduction) tile (raise to 512-2048 at real D_TOTAL)
N_PAD = 128            # lane-dense padded output width (multiple of 128)


def encoder_kernel(x_ref, w_ref, b_ref, out_ref, acc_ref):
    """One (TB, N_PAD) output tile, accumulated over the K grid axis."""
    k = pl.program_id(1)

    @pl.when(k == 0)
    def _init():
        acc_ref[...] = jnp.zeros_like(acc_ref)

    acc_ref[...] += jnp.dot(x_ref[...], w_ref[...],
                            preferred_element_type=jnp.float32)

    @pl.when(k == pl.num_programs(1) - 1)
    def _finalize():
        # bias added exactly once, on the last reduction step
        out_ref[...] = (acc_ref[...] + b_ref[...]).astype(out_ref.dtype)


def fuse_params(params):
    """Fold (3 embeddings + concat + linear_out) into one [D_TOTAL, N_PAD] weight."""
    (w_item, b_item, w_user, b_user, w_feat, b_feat, w_out, b_out) = params
    # cat = [user_emb | item_emb | feat_emb]  ->  block-structured W_cat
    w_cat = jnp.zeros((D_TOTAL, FC_IN), jnp.float32)
    w_cat = w_cat.at[N_ITEMS:N_ITEMS + N_USERS, 0:EMB].set(w_user)      # users -> cols 0:8
    w_cat = w_cat.at[0:N_ITEMS, EMB:2 * EMB].set(w_item)                # items -> cols 8:16
    w_cat = w_cat.at[N_ITEMS + N_USERS:, 2 * EMB:].set(w_feat)          # feats -> cols 16:32
    b_cat = jnp.concatenate([b_user, b_item, b_feat], axis=1)           # [1, FC_IN]

    # fold the output linear layer
    w_fused = w_cat @ w_out                                             # [D_TOTAL, ENCODER_DIM]
    b_fused = b_cat @ w_out + b_out                                     # [1, ENCODER_DIM]

    # pad output columns to a lane-dense multiple of 128
    w_fused = jnp.pad(w_fused, ((0, 0), (0, N_PAD - ENCODER_DIM)))
    b_fused = jnp.pad(b_fused, ((0, 0), (0, N_PAD - ENCODER_DIM)))
    return w_fused, b_fused


@jax.jit
def encoder_forward(x, w_fused, b_fused):
    b = x.shape[0]
    b_pad = pl.cdiv(b, TB) * TB
    if b_pad != b:
        x = jnp.pad(x, ((0, b_pad - b), (0, 0)))
    assert D_TOTAL % TK == 0

    grid = (b_pad // TB, D_TOTAL // TK)   # K (reduction) axis last
    out = pl.pallas_call(
        encoder_kernel,
        out_shape=jax.ShapeDtypeStruct((b_pad, N_PAD), jnp.float32),
        grid_spec=pltpu.PrefetchScalarGridSpec(
            num_scalar_prefetch=0,
            grid=grid,
            in_specs=[
                pl.BlockSpec((TB, TK), lambda i, k: (i, k)),      # x tile
                pl.BlockSpec((TK, N_PAD), lambda i, k: (k, 0)),   # fused weight tile
                pl.BlockSpec((1, N_PAD), lambda i, k: (0, 0)),    # fused bias (resident)
            ],
            out_specs=pl.BlockSpec((TB, N_PAD), lambda i, k: (i, 0)),
            scratch_shapes=[pltpu.VMEM((TB, N_PAD), jnp.float32)],
        ),
        compiler_params=pltpu.CompilerParams(
            dimension_semantics=("parallel", "arbitrary"),
            vmem_limit_bytes=64 << 20,
        ),
    )(x, w_fused, b_fused)
    return out[:b, :ENCODER_DIM]


def init_params(key):
    """Deterministic init. Weights stored [in, out]; biases [1, out]."""
    ks = jax.random.split(key, 8)

    def lin(kw, kb, din, dout):
        bound = 1.0 / (din ** 0.5)
        w = jax.random.uniform(kw, (din, dout), jnp.float32, -bound, bound)
        b = jax.random.uniform(kb, (1, dout), jnp.float32, -bound, bound)
        return w, b

    w_item, b_item = lin(ks[0], ks[1], N_ITEMS, EMB)
    w_user, b_user = lin(ks[2], ks[3], N_USERS, EMB)
    w_feat, b_feat = lin(ks[4], ks[5], FEATURE_DIM, EMB * 2)
    w_out, b_out = lin(ks[6], ks[7], FC_IN, ENCODER_DIM)
    return (w_item, b_item, w_user, b_user, w_feat, b_feat, w_out, b_out)


def encoder_ref(x, params):
    """Pure-JAX reference mirroring the (unfused) PyTorch forward."""
    (w_item, b_item, w_user, b_user, w_feat, b_feat, w_out, b_out) = params
    items = x[:, :N_ITEMS]
    users = x[:, N_ITEMS:N_ITEMS + N_USERS]
    feats = x[:, N_ITEMS + N_USERS:]
    ue = users @ w_user + b_user
    ie = items @ w_item + b_item
    fe = feats @ w_feat + b_feat
    cat = jnp.concatenate([ue, ie, fe], axis=1)
    return cat @ w_out + b_out


if __name__ == "__main__":
    key = jax.random.PRNGKey(0)
    k_x, k_p = jax.random.split(key)
    x = jax.random.normal(k_x, (BATCH, D_TOTAL), jnp.float32)
    params = init_params(k_p)

    w_fused, b_fused = fuse_params(params)   # one-time wrapper-side fold
    out = encoder_forward(x, w_fused, b_fused)
    out = jax.block_until_ready(out)

    ref = encoder_ref(x, params)
    assert out.shape == (BATCH, ENCODER_DIM), out.shape
    max_err = float(jnp.max(jnp.abs(out - ref)))
    assert jnp.allclose(out, ref, atol=1e-4, rtol=1e-4), max_err
    print("KERNEL_OK")
</pallas_src>

<mosaic_0001>
module attributes {stable_mosaic.version = 11 : i64} {
  func.func @encoder_kernel(%arg0: i32, %arg1: i32, %arg2: memref<8x128xf32, #tpu.memory_space<vmem>>, %arg3: memref<128x128xf32, #tpu.memory_space<vmem>>, %arg4: memref<1x128xf32, #tpu.memory_space<vmem>>, %arg5: memref<8x128xf32, #tpu.memory_space<vmem>>, %arg6: memref<8x128xf32, #tpu.memory_space<vmem>>) attributes {dimension_semantics = [#tpu.dimension_semantics<parallel>, #tpu.dimension_semantics<arbitrary>], iteration_bounds = array<i64: 2, 2>, scalar_prefetch = 0 : i64, scratch_operands = 1 : i64, tpu.core_type = #tpu.core_type<tc>, window_params = [{transform_indices = @transform_0, window_bounds = array<i64: 8, 128>}, {transform_indices = @transform_1, window_bounds = array<i64: 128, 128>}, {pipeline_mode = #tpu.pipeline_mode<synchronous>, transform_indices = @transform_2, window_bounds = array<i64: 1, 128>}, {transform_indices = @transform_3, window_bounds = array<i64: 8, 128>}]} {
    %c0_i32 = arith.constant 0 : i32
    %0 = arith.cmpi eq, %arg1, %c0_i32 : i32
    %1 = arith.extui %0 : i1 to i32
    %c0_i32_0 = arith.constant 0 : i32
    %2 = arith.cmpi ne, %1, %c0_i32_0 : i32
    scf.if %2 {
      %cst_9 = arith.constant 0.000000e+00 : f32
      %12 = vector.broadcast %cst_9 : f32 to vector<8x128xf32>
      %c0_10 = arith.constant 0 : index
      %c0_11 = arith.constant 0 : index
      %13 = vector.load %arg6[%c0_10, %c0_11] : memref<8x128xf32, #tpu.memory_space<vmem>>, vector<8x128xf32>
      tpu.vector_store %arg6[%c0_10, %c0_11], %12 {strides = array<i32>} : memref<8x128xf32, #tpu.memory_space<vmem>>, vector<8x128xf32>,
    } else {
    }
    %c0 = arith.constant 0 : index
    %c0_1 = arith.constant 0 : index
    %3 = vector.load %arg6[%c0, %c0_1] : memref<8x128xf32, #tpu.memory_space<vmem>>, vector<8x128xf32>
    %c0_2 = arith.constant 0 : index
    %c0_3 = arith.constant 0 : index
    %4 = vector.load %arg2[%c0_2, %c0_3] : memref<8x128xf32, #tpu.memory_space<vmem>>, vector<8x128xf32>
    %c0_4 = arith.constant 0 : index
    %c0_5 = arith.constant 0 : index
    %5 = vector.load %arg3[%c0_4, %c0_5] : memref<128x128xf32, #tpu.memory_space<vmem>>, vector<128x128xf32>
    %cst = arith.constant dense<0.000000e+00> : vector<8x128xf32>
    %6 = tpu.matmul %4, %5, %cst {dimension_numbers = #tpu.dot_dimension_numbers<[1], [0], [0], [1], [0, 0, 1, 1], [], []>} : vector<8x128xf32>, vector<128x128xf32>, vector<8x128xf32> -> vector<8x128xf32>
    %7 = arith.addf %3, %6 : vector<8x128xf32>
    %c0_6 = arith.constant 0 : index
    %c0_7 = arith.constant 0 : index
    %8 = vector.load %arg6[%c0_6, %c0_7] : memref<8x128xf32, #tpu.memory_space<vmem>>, vector<8x128xf32>
    tpu.vector_store %arg6[%c0_6, %c0_7], %7 {strides = array<i32>} : memref<8x128xf32, #tpu.memory_space<vmem>>, vector<8x128xf32>,
    %c1_i32 = arith.constant 1 : i32
    %9 = arith.cmpi eq, %arg1, %c1_i32 : i32
    %10 = arith.extui %9 : i1 to i32
    %c0_i32_8 = arith.constant 0 : i32
    %11 = arith.cmpi ne, %10, %c0_i32_8 : i32
    scf.if %11 {
      %c0_9 = arith.constant 0 : index
      %c0_10 = arith.constant 0 : index
      %12 = vector.load %arg6[%c0_9, %c0_10] : memref<8x128xf32, #tpu.memory_space<vmem>>, vector<8x128xf32>
      %c0_11 = arith.constant 0 : index
      %c0_12 = arith.constant 0 : index
      %13 = vector.load %arg4[%c0_11, %c0_12] : memref<1x128xf32, #tpu.memory_space<vmem>>, vector<1x128xf32>
      %14 = vector.broadcast %13 : vector<1x128xf32> to vector<8x128xf32>
      %15 = arith.addf %12, %14 : vector<8x128xf32>
      %c0_13 = arith.constant 0 : index
      %c0_14 = arith.constant 0 : index
      %16 = vector.load %arg5[%c0_13, %c0_14] : memref<8x128xf32, #tpu.memory_space<vmem>>, vector<8x128xf32>
      tpu.vector_store %arg5[%c0_13, %c0_14], %15 {strides = array<i32>} : memref<8x128xf32, #tpu.memory_space<vmem>>, vector<8x128xf32>,
    } else {
    }
    return
  }
  func.func @transform_0(%arg0: i32, %arg1: i32) -> (i32, i32) {
    %c0_i32 = arith.constant 0 : i32
    return %arg0, %arg1 : i32, i32
  }
  func.func @transform_1(%arg0: i32, %arg1: i32) -> (i32, i32) {
    %c0_i32 = arith.constant 0 : i32
    %c0_i32_0 = arith.constant 0 : i32
    return %arg1, %c0_i32 : i32, i32
  }
  func.func @transform_2(%arg0: i32, %arg1: i32) -> (i32, i32) {
    %c0_i32 = arith.constant 0 : i32
    %c0_i32_0 = arith.constant 0 : i32
    %c0_i32_1 = arith.constant 0 : i32
    return %c0_i32, %c0_i32_0 : i32, i32
  }
  func.func @transform_3(%arg0: i32, %arg1: i32) -> (i32, i32) {
    %c0_i32 = arith.constant 0 : i32
    %c0_i32_0 = arith.constant 0 : i32
    return %arg0, %c0_i32 : i32, i32
  }
}

</mosaic_0001>

<llo_original>
// kernel: encoder_forward.1
$region0: #{encoder_forward.1}
  #allocation0 [shape = 'u32[]', space=smem, size = 0x4, offset = 0x4, fixed_abs, tag = 'smem constant byte address 0x4 - core index']
  #allocation1 [shape = 'u32[144,128]{1,0:T(1,128)}', space=vmem, size = 0x12000, scoped, tag = 'internal scratch']
  #allocation2 [shape = 'f32[8,128]{1,0:T(8,128)}', space=vmem, size = 0x1000, scoped, tag = 'scratch operand']
  %s0 = inlined_call_operand.hbm [shape: f32[16,256], index: 0, kind: input, shape index: {}]
  %s1 = inlined_call_operand.hbm [shape: f32[256,128], index: 1, kind: input, shape index: {}]
  %s2 = inlined_call_operand.hbm [shape: f32[1,128], index: 2, kind: input, shape index: {}]
  %s3 = inlined_call_operand.hbm [shape: f32[16,128], index: 3, kind: output, shape index: {}]
  %s4 = sld [smem:[#allocation0]]
  $region65: #{encoder_forward.1} parent=0
    _
  %s6 = ssub.s32 1, %s4
  %s7 = scalar_select 0, %s6, %s4
  $region1: #{encoder_forward.1} parent=0
    #allocation3 [shape = 'u8[8192]{0}', space=vmem, size = 0x2000, scoped, tag = 'input window, operand 0']
    #allocation4 [shape = 's32[2]{0}', space=sflag, size = 0x8, scoped, tag = 'scoped memory for encoder_forward.1']
    #allocation5 [shape = 's32[2]{0}', space=sflag, size = 0x8, scoped, tag = 'scoped memory for encoder_forward.1']
    #allocation6 [shape = 'u8[131072]{0}', space=vmem, size = 0x20000, scoped, tag = 'input window, operand 1']
    #allocation7 [shape = 's32[2]{0}', space=sflag, size = 0x8, scoped, tag = 'scoped memory for encoder_forward.1']
    #allocation8 [shape = 'u8[512]{0}', space=vmem, size = 0x400, scoped, tag = 'input window, operand 2, single buffered']
    #allocation9 [shape = 'u8[8192]{0}', space=vmem, size = 0x2000, scoped, tag = 'output window, operand 0']
    %8 = vsyncpa [#allocation4], 0
    %s9 = scalar_lea.sflag [#allocation4], 1
    %10 = vsyncpa %s9, 0
    %11 = vsyncpa [#allocation7], 0
    %s12 = scalar_lea.sflag [#allocation7], 1
    %13 = vsyncpa %s12, 0
    %14 = vsyncpa [#allocation5], 0
    %s15 = scalar_lea.sflag [#allocation5], 1
    %16 = vsyncpa %s15, 0
    loop: start=0, step=1, limit=6
    $region2: #{encoder_forward.1} parent=1 // loop_pre_header
      _
    $region3: #{encoder_forward.1} parent=1 // loop_header
      %s18 = sphi 0, %s22
      %p19 = scmp.ge.s32.totalorder %s18, 6
      %s25 = sphi 0, %s37
      %s26 = sphi 0, %s33
      %s27 = sphi 0, %s25
      %s28 = sphi 0, %s26
      %s29 = sphi 0, %s27
      %s30 = sphi 0, %s28
      %s42 = sphi 0, %s44
      %s45 = sphi 0, %s42
      %s46 = sphi 0, %s45
      %s62 = sphi 0, %s46
      %s68 = sphi 0, %s70
      %s71 = sphi 0, %s68
      %s72 = sphi 0, %s71
      %s88 = sphi 0, %s72
      %s92 = sphi 0, %s92
      %s94 = sphi 0, %s92
      %s95 = sphi 0, %s94
      %s109 = sphi 0, %s95
      %s115 = sphi 0, %s117
      %s118 = sphi 0, %s115
      %s119 = sphi 0, %s118
      %s135 = sphi 0, %s119
    $region4: #{encoder_forward.1} parent=1 // loop_header_branch
      %21 = sbr.rel (%p19) target = $region8
    $region5: #{encoder_forward.1} parent=1 // loop_body
      %s23 = ssub.s32 %s18, 1
      %s24 = ssub.s32 %s18, 2
      %s31 = sadd.s32 1, %s26
      %p32 = scmp.ge.s32.totalorder %s31, 2
      %s33 = scalar_select %p32, 0, %s31
      %s34 = sadd.s32 1, %s25
      %s35 = scalar_select %p32, %s34, %s25
      %p36 = scmp.ge.s32.totalorder %s35, 2
      %s37 = scalar_select %p36, 0, %s35
      %s38 = ssub.s32 %s25, %s37
      %s39 = ssub.s32 %s26, %s33
      %s40 = sor.u32 %s38, %s39
      %p41 = scmp.eq.s32.totalorder %s40, 0
      %s43 = sadd.s32 %s42, 1
      %s44 = scalar_select %p41, %s42, %s43
      %p47 = pneg %p41
      %p48 = scmp.eq.s32.totalorder %s18, 3
      %p49 = por %p47, %p48
      %p50 = scmp.ne.s32.totalorder %s42, %s45
      %p51 = scmp.eq.s32.totalorder %s18, 0
      %p52 = por %p50, %p51
      %p53 = scmp.ne.s32.totalorder %s42, %s45
      %p54 = scmp.eq.s32.totalorder %s23, 3
      %p55 = por %p53, %p54
      %p56 = scmp.ne.s32.totalorder %s45, %s46
      %p57 = scmp.eq.s32.totalorder %s23, 0
      %p58 = por %p56, %p57
      %p59 = scmp.ne.s32.totalorder %s45, %s46
      %p60 = scmp.eq.s32.totalorder %s24, 3
      %p61 = por %p59, %p60
      %p63 = scmp.ne.s32.totalorder %s46, %s62
      %p64 = scmp.eq.s32.totalorder %s24, 0
      %p65 = por %p63, %p64
      %s66 = ssub.s32 %s26, %s33
      %p67 = scmp.eq.s32.totalorder %s66, 0
      %s69 = sadd.s32 %s68, 1
      %s70 = scalar_select %p67, %s68, %s69
      %p73 = pneg %p67
      %p74 = scmp.eq.s32.totalorder %s18, 3
      %p75 = por %p73, %p74
      %p76 = scmp.ne.s32.totalorder %s68, %s71
      %p77 = scmp.eq.s32.totalorder %s18, 0
      %p78 = por %p76, %p77
      %p79 = scmp.ne.s32.totalorder %s68, %s71
      %p80 = scmp.eq.s32.totalorder %s23, 3
      %p81 = por %p79, %p80
      %p82 = scmp.ne.s32.totalorder %s71, %s72
      %p83 = scmp.eq.s32.totalorder %s23, 0
      %p84 = por %p82, %p83
      %p85 = scmp.ne.s32.totalorder %s71, %s72
      %p86 = scmp.eq.s32.totalorder %s24, 3
      %p87 = por %p85, %p86
      %p89 = scmp.ne.s32.totalorder %s72, %s88
      %p90 = scmp.eq.s32.totalorder %s24, 0
      %p91 = por %p89, %p90
      %s93 = sadd.s32 %s92, 1
      %p96 = scmp.eq.s32.totalorder %s18, 3
      %p97 = scmp.ne.s32.totalorder %s92, %s94
      %p98 = scmp.eq.s32.totalorder %s18, 0
      %p99 = por %p97, %p98
      %p100 = scmp.ne.s32.totalorder %s92, %s94
      %p101 = scmp.eq.s32.totalorder %s23, 3
      %p102 = por %p100, %p101
      %p103 = scmp.ne.s32.totalorder %s94, %s95
      %p104 = scmp.eq.s32.totalorder %s23, 0
      %p105 = por %p103, %p104
      %p106 = scmp.ne.s32.totalorder %s94, %s95
      %p107 = scmp.eq.s32.totalorder %s24, 3
      %p108 = por %p106, %p107
      %p110 = scmp.ne.s32.totalorder %s95, %s109
      %p111 = scmp.eq.s32.totalorder %s24, 0
      %p112 = por %p110, %p111
      %s113 = ssub.s32 %s25, %s37
      %p114 = scmp.eq.s32.totalorder %s113, 0
      %s116 = sadd.s32 %s115, 1
      %s117 = scalar_select %p114, %s115, %s116
      %p120 = pneg %p114
      %p121 = scmp.eq.s32.totalorder %s18, 3
      %p122 = por %p120, %p121
      %p123 = scmp.ne.s32.totalorder %s115, %s118
      %p124 = scmp.eq.s32.totalorder %s18, 0
      %p125 = por %p123, %p124
      %p126 = scmp.ne.s32.totalorder %s115, %s118
      %p127 = scmp.eq.s32.totalorder %s23, 3
      %p128 = por %p126, %p127
      %p129 = scmp.ne.s32.totalorder %s118, %s119
      %p130 = scmp.eq.s32.totalorder %s23, 0
      %p131 = por %p129, %p130
      %p132 = scmp.ne.s32.totalorder %s118, %s119
      %p133 = scmp.eq.s32.totalorder %s24, 3
      %p134 = por %p132, %p133
      %p136 = scmp.ne.s32.totalorder %s119, %s135
      %p137 = scmp.eq.s32.totalorder %s24, 0
      %p138 = por %p136, %p137
      %p139 = scmp.le.s32.totalorder 1, %s18
      %p140 = scmp.lt.s32.totalorder %s18, 5
      %p141 = pnand %p139, %p140
      %p142 = pneg %p141
      // Predicated region
      $region9: #{encoder_forward.1} parent=5 // pred_check
        _
      $region10: #{encoder_forward.1} parent=5 // pred_check_branch
        %144 = sbr.rel (%p141) target = $region12
      $region11: #{encoder_forward.1} parent=5 // pred_region
        %s145 = ssub.s32 %s18, 1
        // Predicated region
        $region13: #{encoder_forward.1} parent=11 // pred_check
          %p146 = pneg %p105
        $region14: #{encoder_forward.1} parent=11 // pred_check_branch
          %148 = sbr.rel (%p146) target = $region16
        $region15: #{encoder_forward.1} parent=11 // pred_region
          %s150 = ssub.s32 16, 16
          %151 = vsyncadd [#allocation7], %s150
          %s153 = sshll.u32 [#allocation8], 4
          %s154 = int_to_ptr.vmem [resolvable:$true] %s153
          %156 = dma.hbm_to_vmem [thread:$0]  %s2, 16, %s154, [#allocation7]
        $region16: #{encoder_forward.1} parent=11 // pred_fallthru
          _
      $region12: #{encoder_forward.1} parent=5 // pred_fallthru
        _
      %p157 = scmp.lt.s32.totalorder %s18, 4
      // Predicated region
      $region17: #{encoder_forward.1} parent=5 // pred_check
        %p158 = pneg %p157
      $region18: #{encoder_forward.1} parent=5 // pred_check_branch
        %160 = sbr.rel (%p158) target = $region20
      $region19: #{encoder_forward.1} parent=5 // pred_region
        // Predicated region
        $region21: #{encoder_forward.1} parent=19 // pred_check
          %p161 = pneg %p52
        $region22: #{encoder_forward.1} parent=19 // pred_check_branch
          %163 = sbr.rel (%p161) target = $region24
        $region23: #{encoder_forward.1} parent=19 // pred_region
          %s164 = sand.u32 %s42, 1
          %s165 = scalar_lea.sflag [#allocation4], %s164
          %s166 = sand.u32 %s42, 1
          %s167 = smul.addr %s166, 8
          %s168 = scalar_lea.vmem [#allocation3], %s167
          %s170 = ssub.s32 128, 128
          %171 = vsyncadd %s165, %s170
          %s172 = smul.addr %s25, 2
          %s173 = sadd.s32 %s26, %s172
          %s174 = smul.addr %s173, 128
          %s175 = scalar_lea.hbm %s0, %s174
          %s177 = sshll.u32 %s168, 4
          %s178 = int_to_ptr.vmem [resolvable:$true] %s177
          %180 = dma.hbm_to_vmem [thread:$0]  %s175, 128, %s178, %s165
        $region24: #{encoder_forward.1} parent=19 // pred_fallthru
          _
        // Predicated region
        $region25: #{encoder_forward.1} parent=19 // pred_check
          %p181 = pneg %p78
        $region26: #{encoder_forward.1} parent=19 // pred_check_branch
          %183 = sbr.rel (%p181) target = $region28
        $region27: #{encoder_forward.1} parent=19 // pred_region
          %s184 = sand.u32 %s18, 1
          %s185 = scalar_lea.sflag [#allocation7], %s184
          %s186 = sand.u32 %s68, 1
          %s187 = smul.addr %s186, 128
          %s188 = scalar_lea.vmem [#allocation6], %s187
          %s189 = smul.u32 16, %s26
          %s191 = ssub.s32 2048, 2048
          %192 = vsyncadd %s185, %s191
          %s193 = smul.addr %s189, 128
          %s194 = scalar_lea.hbm %s1, %s193
          %s195 = sshll.u32 %s188, 4
          %s196 = int_to_ptr.vmem [resolvable:$true] %s195
          %201 = dma.hbm_to_vmem [thread:$0]  %s194, 2048, %s196, %s185, 128, 128, 8
        $region28: #{encoder_forward.1} parent=19 // pred_fallthru
          _
      $region20: #{encoder_forward.1} parent=5 // pred_fallthru
        _
      %p202 = scmp.le.s32.totalorder 1, %s18
      %p203 = scmp.lt.s32.totalorder %s18, 5
      %p204 = pnand %p202, %p203
      %p205 = pneg %p204
      // Predicated region
      $region29: #{encoder_forward.1} parent=5 // pred_check
        _
      $region30: #{encoder_forward.1} parent=5 // pred_check_branch
        %207 = sbr.rel (%p204) target = $region32
      $region31: #{encoder_forward.1} parent=5 // pred_region
        %s208 = ssub.s32 %s18, 1
        %s209 = sand.u32 %s45, 1
        %s210 = scalar_lea.sflag [#allocation4], %s209
        %s211 = sand.u32 %s45, 1
        %s212 = smul.addr %s211, 8
        %s213 = scalar_lea.vmem [#allocation3], %s212
        // Predicated region
        $region33: #{encoder_forward.1} parent=31 // pred_check
          %p214 = pneg %p58
        $region34: #{encoder_forward.1} parent=31 // pred_check_branch
          %216 = sbr.rel (%p214) target = $region36
        $region35: #{encoder_forward.1} parent=31 // pred_region
          %217 = dma.done %s210, 128
        $region36: #{encoder_forward.1} parent=31 // pred_fallthru
          _
        %s218 = sand.u32 %s23, 1
        %s219 = scalar_lea.sflag [#allocation7], %s218
        %s220 = sand.u32 %s71, 1
        %s221 = smul.addr %s220, 128
        %s222 = scalar_lea.vmem [#allocation6], %s221
        // Predicated region
        $region37: #{encoder_forward.1} parent=31 // pred_check
          %p223 = pneg %p84
        $region38: #{encoder_forward.1} parent=31 // pred_check_branch
          %225 = sbr.rel (%p223) target = $region40
        $region39: #{encoder_forward.1} parent=31 // pred_region
          %226 = dma.done %s219, 2048
        $region40: #{encoder_forward.1} parent=31 // pred_fallthru
          _
        // Predicated region
        $region41: #{encoder_forward.1} parent=31 // pred_check
          %p227 = pneg %p105
        $region42: #{encoder_forward.1} parent=31 // pred_check_branch
          %229 = sbr.rel (%p227) target = $region44
        $region43: #{encoder_forward.1} parent=31 // pred_region
          %230 = dma.done [#allocation7], 16
        $region44: #{encoder_forward.1} parent=31 // pred_fallthru
          _
        %s231 = sand.u32 %s45, 1
        %s232 = scalar_lea.sflag [#allocation4], %s231
        %s233 = sand.u32 %s45, 1
        %s234 = smul.addr %s233, 8
        %s235 = scalar_lea.vmem [#allocation3], %s234
        %p236 = pneg %p58
        %p237 = pneg %p55
        %s238 = sand.u32 %s23, 1
        %s239 = scalar_lea.sflag [#allocation7], %s238
        %s240 = sand.u32 %s71, 1
        %s241 = smul.addr %s240, 128
        %s242 = scalar_lea.vmem [#allocation6], %s241
        %p243 = pneg %p84
        %p244 = pneg %p81
        %p245 = pneg %p105
        %p246 = pneg %p102
        %p247 = pneg %p131
        %p248 = pneg %p128
        %s249 = sand.u32 %s118, 1
        %s250 = scalar_lea.sflag [#allocation5], %s249
        %s251 = sand.u32 %s118, 1
        %s252 = smul.addr %s251, 8
        %s253 = scalar_lea.vmem [#allocation9], %s252
        %s254 = smul.u32 16, %s28
        %p255 = scmp.eq.s32.totalorder %s28, 0
        // Predicated region
        $region45: #{encoder_forward.1} parent=31 // pred_check
          %p256 = pneg %p255
        $region46: #{encoder_forward.1} parent=31 // pred_check_branch
          %258 = sbr.rel (%p256) target = $region48
        $region47: #{encoder_forward.1} parent=31 // pred_region
          %259 = vst [vmem:[#allocation2] sm:$0xff] 0.0
        $region48: #{encoder_forward.1} parent=31 // pred_fallthru
          _
        %v260 = vld [vmem:[#allocation2] sm:$0xff]
        %v261 = vld [vmem:[%s213] sm:$0xff]
        %v262 = vld [vmem:[%s222] sm:$0xff]
        %v263 = vld [vmem:[%s222 + $0x8] sm:$0xff]
        %v264 = vld [vmem:[%s222 + $0x10] sm:$0xff]
        %v265 = vld [vmem:[%s222 + $0x18] sm:$0xff]
        %v266 = vld [vmem:[%s222 + $0x20] sm:$0xff]
        %v267 = vld [vmem:[%s222 + $0x28] sm:$0xff]
        %v268 = vld [vmem:[%s222 + $0x30] sm:$0xff]
        %v269 = vld [vmem:[%s222 + $0x38] sm:$0xff]
        %v270 = vld [vmem:[%s222 + $0x40] sm:$0xff]
        %v271 = vld [vmem:[%s222 + $0x48] sm:$0xff]
        %v272 = vld [vmem:[%s222 + $0x50] sm:$0xff]
        %v273 = vld [vmem:[%s222 + $0x58] sm:$0xff]
        %v274 = vld [vmem:[%s222 + $0x60] sm:$0xff]
        %v275 = vld [vmem:[%s222 + $0x68] sm:$0xff]
        %v276 = vld [vmem:[%s222 + $0x70] sm:$0xff]
        %v277 = vld [vmem:[%s222 + $0x78] sm:$0xff]
        %278 = vmatprep.subr.mxu0 0.0
        %279 = vmatpush1.msra.mxu0 %v262
        %280 = vmatprep.subr.mxu0 0.0
        %281 = vmatpush1.msra.mxu0 %v263
        %282 = vmatprep.subr.mxu0 0.0
        %283 = vmatpush1.msra.mxu0 %v264
        %284 = vmatprep.subr.mxu0 0.0
        %285 = vmatpush1.msra.mxu0 %v265
        %286 = vmatprep.subr.mxu0 0.0
        %287 = vmatpush1.msra.mxu0 %v266
        %288 = vmatprep.subr.mxu0 0.0
        %289 = vmatpush1.msra.mxu0 %v267
        %290 = vmatprep.subr.mxu0 0.0
        %291 = vmatpush1.msra.mxu0 %v268
        %292 = vmatprep.subr.mxu0 0.0
        %293 = vmatpush1.msra.mxu0 %v269
        %294 = vmatprep.subr.mxu0 0.0
        %295 = vmatpush1.msra.mxu0 %v270
        %296 = vmatprep.subr.mxu0 0.0
        %297 = vmatpush1.msra.mxu0 %v271
        %298 = vmatprep.subr.mxu0 0.0
        %299 = vmatpush1.msra.mxu0 %v272
        %300 = vmatprep.subr.mxu0 0.0
        %301 = vmatpush1.msra.mxu0 %v273
        %302 = vmatprep.subr.mxu0 0.0
        %303 = vmatpush1.msra.mxu0 %v274
        %304 = vmatprep.subr.mxu0 0.0
        %305 = vmatpush1.msra.mxu0 %v275
        %306 = vmatprep.subr.mxu0 0.0
        %307 = vmatpush1.msra.mxu0 %v276
        %308 = vmatprep.subr.mxu0 0.0
        %309 = vmatpush1.msra.mxu0 %v277
        %310 = vmatprep.subr.mxu0 0.0
        %311 = vmatpush1.msra.mxu0 0.0
        %312 = vmatprep.subr.mxu0 0.0
        %313 = vmatpush1.msra.mxu0 0.0
        %314 = vmatprep.subr.mxu0 0.0
        %315 = vmatpush1.msra.mxu0 0.0
        %316 = vmatprep.subr.mxu0 0.0
        %317 = vmatpush1.msra.mxu0 0.0
        %318 = vmatprep.subr.mxu0 0.0
        %319 = vmatpush1.msra.mxu0 0.0
        %320 = vmatprep.subr.mxu0 0.0
        %321 = vmatpush1.msra.mxu0 0.0
        %322 = vmatprep.subr.mxu0 0.0
        %323 = vmatpush1.msra.mxu0 0.0
        %324 = vmatprep.subr.mxu0 0.0
        %325 = vmatpush1.msra.mxu0 0.0
        %326 = vmatprep.subr.mxu0 0.0
        %327 = vmatpush1.msra.mxu0 0.0
        %328 = vmatprep.subr.mxu0 0.0
        %329 = vmatpush1.msra.mxu0 0.0
        %330 = vmatprep.subr.mxu0 0.0
        %331 = vmatpush1.msra.mxu0 0.0
        %332 = vmatprep.subr.mxu0 0.0
        %333 = vmatpush1.msra.mxu0 0.0
        %334 = vmatprep.subr.mxu0 0.0
        %335 = vmatpush1.msra.mxu0 0.0
        %336 = vmatprep.subr.mxu0 0.0
        %337 = vmatpush1.msra.mxu0 0.0
        %338 = vmatprep.subr.mxu0 0.0
        %339 = vmatpush1.msra.mxu0 0.0
        %340 = vmatprep.subr.mxu0 0.0
        %341 = vmatpush1.msra.mxu0 0.0
        %342 = vmatprep.mubr.f32.mxu0 0.0
        %343 = vmatmul.mubr.f32.gmra.mrb[0].mxu0 %v261
        %v344 = vpop.f32.mrb[0].mxu0
        %v345 = vadd.f32 0.0, %v344
        %v346 = vpop.f32.mrb[0].mxu0
        %347 = vdwg.mxu0
        %v348 = vadd.f32 %v260, %v345
        %349 = vst [vmem:[#allocation2] sm:$0xff] %v348
        %p350 = scmp.eq.s32.totalorder %s28, 1
        // Predicated region
        $region49: #{encoder_forward.1} parent=31 // pred_check
          %p351 = pneg %p350
        $region50: #{encoder_forward.1} parent=31 // pred_check_branch
          %353 = sbr.rel (%p351) target = $region52
        $region51: #{encoder_forward.1} parent=31 // pred_region
          %v354 = vld [vmem:[#allocation2] sm:$0xff]
          %v355 = vld [vmem:[#allocation8] sm:$0x1]
          %v357 = vlaneseq
          %v358 = vshrl.u32 %v357, 7
          %v359 = vsub.s32 0, %v358
          %v360 = vrot.slane %v355, %v359
          %v362 = vadd.f32 %v354, %v360
          %363 = vst [vmem:[%s253] sm:$0xff] %v362
        $region52: #{encoder_forward.1} parent=31 // pred_fallthru
          _
        %s364 = sand.u32 %s118, 1
        %s365 = scalar_lea.sflag [#allocation5], %s364
        %s366 = sand.u32 %s118, 1
        %s367 = smul.addr %s366, 8
        %s368 = scalar_lea.vmem [#allocation9], %s367
        // Predicated region
        $region53: #{encoder_forward.1} parent=31 // pred_check
          %p369 = pneg %p128
        $region54: #{encoder_forward.1} parent=31 // pred_check_branch
          %371 = sbr.rel (%p369) target = $region56
        $region55: #{encoder_forward.1} parent=31 // pred_region
          %s373 = ssub.s32 128, 128
          %374 = vsyncadd %s365, %s373
          %s375 = smul.addr %s27, 128
          %s376 = scalar_lea.hbm %s3, %s375
          %s378 = sshll.u32 %s368, 4
          %s379 = int_to_ptr.vmem [resolvable:$true] %s378
          %381 = dma.vmem_to_hbm [thread:$0]  %s379, 128, %s376, %s365
        $region56: #{encoder_forward.1} parent=31 // pred_fallthru
          _
      $region32: #{encoder_forward.1} parent=5 // pred_fallthru
        _
      %p382 = scmp.le.s32.totalorder 2, %s18
      // Predicated region
      $region57: #{encoder_forward.1} parent=5 // pred_check
        %p383 = pneg %p382
      $region58: #{encoder_forward.1} parent=5 // pred_check_branch
        %385 = sbr.rel (%p383) target = $region60
      $region59: #{encoder_forward.1} parent=5 // pred_region
        %s386 = ssub.s32 %s18, 2
        // Predicated region
        $region61: #{encoder_forward.1} parent=59 // pred_check
          %p387 = pneg %p134
        $region62: #{encoder_forward.1} parent=59 // pred_check_branch
          %389 = sbr.rel (%p387) target = $region64
        $region63: #{encoder_forward.1} parent=59 // pred_region
          %s390 = sand.u32 %s119, 1
          %s391 = scalar_lea.sflag [#allocation5], %s390
          %s392 = sand.u32 %s119, 1
          %s393 = smul.addr %s392, 8
          %s394 = scalar_lea.vmem [#allocation9], %s393
          %395 = dma.done %s391, 128
        $region64: #{encoder_forward.1} parent=59 // pred_fallthru
          _
      $region60: #{encoder_forward.1} parent=5 // pred_fallthru
        _
    $region6: #{encoder_forward.1} parent=1 // loop_footer
      %s22 = sadd.s32 1, %s18
    $region7: #{encoder_forward.1} parent=1 // loop_footer_branch
      %17 = sbr.rel target = $region3
    $region8: #{encoder_forward.1} parent=1 // loop_exit
      _
    %396 = vsyncpa [#allocation4], 1
    %s397 = scalar_lea.sflag [#allocation4], 1
    %398 = vsyncpa %s397, 1
    %399 = vsyncpa [#allocation7], 1
    %s400 = scalar_lea.sflag [#allocation7], 1
    %401 = vsyncpa %s400, 1
    %402 = vsyncpa [#allocation5], 1
    %s403 = scalar_lea.sflag [#allocation5], 1
    %404 = vsyncpa %s403, 1

</llo_original>
